<compile_context>
chip_gen: v5e
topology: v5e:2x2
jax: 0.10.0
libtpu: 0.0.40
codegen_flags: <defaults>
</compile_context>

<pallas_src>
import functools

import jax
import jax.numpy as jnp
from jax import lax
from jax.experimental import pallas as pl
from jax.experimental.pallas import tpu as pltpu


def _mca_kernel(y_ref, k_ref, v_ref, tt_ref, mrep_ref, lnw_ref, lnb_ref,
                wq_ref, wo_ref, out_ref, oh_scr, *, heads, dim_head):
    # ---- LayerNorm (eps=1e-5, biased variance, learned affine) in f32 ----
    y = y_ref[0].astype(jnp.float32)                                 # (tq, D)
    mean = jnp.mean(y, axis=-1, keepdims=True)
    var = jnp.mean((y - mean) ** 2, axis=-1, keepdims=True)
    y_n = (y - mean) * lax.rsqrt(var + 1e-5)
    y_n = y_n * lnw_ref[...] + lnb_ref[...]                          # (tq, D)

    # ---- fused Q projection: one MXU-filling matmul (scale folded into Wq) ----
    q_all = jnp.dot(y_n.astype(jnp.bfloat16), wq_ref[...],
                    preferred_element_type=jnp.float32)              # (tq, H*Dh)

    # ---- media mask: (tq,1) int == (1,S) int -> (tq,S) bool ----
    mask = tt_ref[0] == mrep_ref[...]
    neg_big = -jnp.finfo(jnp.float32).max

    # ---- per-head attention; each head writes its disjoint lane slice of the
    #      (tq, H*Dh) VMEM scratch, so no f32 accumulator value is carried
    #      live across iterations (live ranges stay bounded despite unrolling).
    for h in range(heads):
        lo = h * dim_head
        qh = q_all[:, lo:lo + dim_head].astype(jnp.bfloat16)         # (tq, Dh)
        sim = jnp.dot(qh, k_ref[0, h],
                      preferred_element_type=jnp.float32)            # (tq, S)
        sim = jnp.where(mask, sim, neg_big)
        sim = sim - jnp.max(sim, axis=-1, keepdims=True)
        e = jnp.exp(sim)
        inv = pl.reciprocal(jnp.sum(e, axis=-1, keepdims=True), approx=True)
        alphas = (e * inv).astype(jnp.bfloat16)                      # (tq, S)
        oh = jnp.dot(alphas, v_ref[0, h],
                     preferred_element_type=jnp.float32)             # (tq, Dh)
        oh_scr[:, lo:lo + dim_head] = oh

    # ---- single fused output projection: (tq, H*Dh) @ (H*Dh, D) ----
    out_ref[0] = jnp.dot(oh_scr[...].astype(jnp.bfloat16), wo_ref[...],
                         preferred_element_type=jnp.float32)


def masked_cross_attention(y, visual_features, media_locations, params,
                           *, heads, dim_head, n_visual):
    """Forward pass of MaskedCrossAttention (previous_kv=None, output_kv=False)."""
    B, T, D = y.shape
    _, n_media, n_q, Dv = visual_features.shape
    assert n_q == n_visual
    S = n_media * n_visual
    inner = heads * dim_head
    scale = dim_head ** -0.5

    # ---- T tiling: one tile if short (no pad), else 256-row tiles + pad ----
    if T <= 512:
        tq, T_pad = T, T
    else:
        tq = 256
        T_pad = pl.cdiv(T, tq) * tq
    nT = T_pad // tq

    y_bf = y.astype(jnp.bfloat16)
    text_time = jnp.cumsum(media_locations.astype(jnp.int32), axis=-1)      # (B, T)
    if T_pad != T:
        # TODO(synk): mask the ragged last tile in-kernel instead of padding.
        y_bf = jnp.pad(y_bf, ((0, 0), (0, T_pad - T), (0, 0)))
        text_time = jnp.pad(text_time, ((0, 0), (0, T_pad - T)))
    text_time = text_time.reshape(B, T_pad, 1)

    # ---- K/V precomputed outside the kernel (batched, full-MXU), bf16 ----
    vis_flat = visual_features.reshape(B, S, Dv).astype(jnp.bfloat16)
    wk_bf = params["wk"].astype(jnp.bfloat16)                                # (Dv, inner)
    wv_bf = params["wv"].astype(jnp.bfloat16)
    k = jnp.einsum("bsv,vi->bsi", vis_flat, wk_bf,
                   preferred_element_type=jnp.float32)                       # (B, S, inner)
    v = jnp.einsum("bsv,vi->bsi", vis_flat, wv_bf,
                   preferred_element_type=jnp.float32)
    k_h = (k.reshape(B, S, heads, dim_head).transpose(0, 2, 3, 1)
            .astype(jnp.bfloat16))                                           # (B, H, Dh, S)
    v_h = (v.reshape(B, S, heads, dim_head).transpose(0, 2, 1, 3)
            .astype(jnp.bfloat16))                                           # (B, H, S, Dh)

    # Precomputed media index row (kv axis): repeat(arange(n_media)+1, n_visual).
    media_rep = (jnp.repeat(jnp.arange(n_media, dtype=jnp.int32) + 1, n_visual)
                 .reshape(1, S))

    lnw = params["ln_w"].reshape(1, D).astype(jnp.float32)
    lnb = params["ln_b"].reshape(1, D).astype(jnp.float32)
    # Lane-dense weight layouts; q scale folded into Wq.
    wq = (params["wq"].astype(jnp.float32) * scale).astype(jnp.bfloat16)     # (D, inner)
    wo = params["wo"].astype(jnp.bfloat16)                                   # (inner, D)

    kernel = functools.partial(_mca_kernel, heads=heads, dim_head=dim_head)

    # ---- VMEM budget: 1.3x accurate estimate, capped at 75% of physical VMEM ----
    def nbytes(shape, dt):
        n = 1
        for s in shape:
            n *= s
        return n * jnp.dtype(dt).itemsize

    est = 2 * (nbytes((1, tq, D), jnp.bfloat16)                   # y (dbl-buffered)
               + nbytes((1, heads, dim_head, S), jnp.bfloat16)    # K^T
               + nbytes((1, heads, S, dim_head), jnp.bfloat16)    # V
               + nbytes((1, tq, 1), jnp.int32)                    # text_time
               + nbytes((1, S), jnp.int32)                        # media_rep
               + 2 * nbytes((1, D), jnp.float32)                  # ln w/b
               + nbytes((D, inner), jnp.bfloat16)                 # Wq
               + nbytes((inner, D), jnp.bfloat16)                 # Wo
               + nbytes((1, tq, D), jnp.float32)) \
          + nbytes((tq, inner), jnp.float32)                      # oh scratch (x1)
    try:
        vmem_cap = int(pltpu.get_tpu_info().vmem_capacity_bytes)
    except Exception:  # conservative fallback (v7x-sized physical VMEM)
        vmem_cap = 64 * 1024 * 1024
    vmem_limit = int(min(3 * vmem_cap // 4,
                         max(32 * 1024 * 1024, int(1.3 * est))))

    grid_spec = pltpu.PrefetchScalarGridSpec(
        num_scalar_prefetch=0,
        grid=(B, nT),
        in_specs=[
            pl.BlockSpec((1, tq, D), lambda b, t: (b, t, 0)),                 # y (bf16)
            pl.BlockSpec((1, heads, dim_head, S), lambda b, t: (b, 0, 0, 0)),  # K^T
            pl.BlockSpec((1, heads, S, dim_head), lambda b, t: (b, 0, 0, 0)),  # V
            pl.BlockSpec((1, tq, 1), lambda b, t: (b, t, 0)),                 # text_time
            pl.BlockSpec((1, S), lambda b, t: (0, 0)),                        # media_rep
            pl.BlockSpec((1, D), lambda b, t: (0, 0)),                        # ln weight
            pl.BlockSpec((1, D), lambda b, t: (0, 0)),                        # ln bias
            pl.BlockSpec((D, inner), lambda b, t: (0, 0)),                    # Wq (scaled)
            pl.BlockSpec((inner, D), lambda b, t: (0, 0)),                    # Wo
        ],
        out_specs=pl.BlockSpec((1, tq, D), lambda b, t: (b, t, 0)),
        scratch_shapes=[pltpu.VMEM((tq, inner), jnp.float32)],                # per-head out
    )

    out = pl.pallas_call(
        kernel,
        out_shape=jax.ShapeDtypeStruct((B, T_pad, D), jnp.float32),
        grid_spec=grid_spec,
        compiler_params=pltpu.CompilerParams(
            dimension_semantics=("parallel", "parallel"),
            vmem_limit_bytes=vmem_limit),
    )(y_bf, k_h, v_h, text_time, media_rep, lnw, lnb, wq, wo)

    return out[:, :T, :]


def masked_cross_attention_ref(y, visual_features, media_locations, params,
                               *, heads, dim_head, n_visual):
    """Pure-JAX f32 reference mirroring the PyTorch forward (previous_kv=None)."""
    B, T, D = y.shape
    _, n_media, _, Dv = visual_features.shape
    scale = dim_head ** -0.5

    mean = jnp.mean(y, axis=-1, keepdims=True)
    var = jnp.mean((y - mean) ** 2, axis=-1, keepdims=True)
    y_n = (y - mean) / jnp.sqrt(var + 1e-5) * params["ln_w"] + params["ln_b"]

    q = (y_n @ params["wq"]) * scale                          # (B, T, H*Dh)
    vis = visual_features.reshape(B, n_media * n_visual, Dv)
    k = vis @ params["wk"]
    v = vis @ params["wv"]

    def split(x):
        return x.reshape(x.shape[0], x.shape[1], heads, dim_head).transpose(0, 2, 1, 3)
    qh, kh, vh = split(q), split(k), split(v)                 # (B, H, n, Dh)

    sim = jnp.einsum("bhid,bhjd->bhij", qh, kh)
    text_time = jnp.cumsum(media_locations.astype(jnp.int32), axis=-1)   # (B, T)
    media_time = jnp.arange(n_media) + 1
    media_rep = jnp.repeat(media_time, n_visual)                          # (S,)
    mask = text_time[:, None, :, None] == media_rep[None, None, None, :]  # (B,1,T,S)
    sim = jnp.where(mask, sim, -jnp.finfo(sim.dtype).max)
    sim = sim - jnp.max(sim, axis=-1, keepdims=True)
    alphas = jax.nn.softmax(sim, axis=-1)
    out = jnp.einsum("bhij,bhjd->bhid", alphas, vh)
    out = out.transpose(0, 2, 1, 3).reshape(B, T, heads * dim_head)
    return out @ params["wo"]


if __name__ == "__main__":
    # Small, module-consistent shapes.
    B, T = 2, 8          # batch, language tokens
    D = 32               # dim (d_token)
    Dv = 16              # dim_visual
    heads, dim_head = 2, 8
    n_media, n_visual = 2, 4

    key = jax.random.PRNGKey(0)
    k_y, k_vis, k_loc, kq, kk, kv, ko = jax.random.split(key, 7)

    y = jax.random.normal(k_y, (B, T, D), dtype=jnp.float32)
    visual_features = jax.random.normal(k_vis, (B, n_media, n_visual, Dv), dtype=jnp.float32)
    # deterministic media locations: an <image> token at positions 1 and 5
    media_locations = jnp.zeros((B, T), dtype=bool).at[:, 1].set(True).at[:, 5].set(True)

    inner = heads * dim_head
    params = {
        "ln_w": jnp.ones((D,), jnp.float32),
        "ln_b": jnp.zeros((D,), jnp.float32),
        "wq": 0.1 * jax.random.normal(kq, (D, inner), dtype=jnp.float32),
        "wk": 0.1 * jax.random.normal(kk, (Dv, inner), dtype=jnp.float32),
        "wv": 0.1 * jax.random.normal(kv, (Dv, inner), dtype=jnp.float32),
        "wo": 0.1 * jax.random.normal(ko, (inner, D), dtype=jnp.float32),
    }

    out = masked_cross_attention(y, visual_features, media_locations, params,
                                 heads=heads, dim_head=dim_head, n_visual=n_visual)
    out = jax.block_until_ready(out)

    ref = masked_cross_attention_ref(y, visual_features, media_locations, params,
                                     heads=heads, dim_head=dim_head, n_visual=n_visual)
    assert out.shape == (B, T, D)
    # bf16 activations/MXU operands (f32 accumulation) -> loosened tolerance vs f32 ref.
    assert jnp.allclose(out, ref, atol=3e-2, rtol=3e-2), "mismatch vs reference"
    print("KERNEL_OK")
</pallas_src>

<mosaic_0001>
module attributes {stable_mosaic.version = 11 : i64} {
  func.func @_mca_kernel(%arg0: i32, %arg1: i32, %arg2: memref<1x8x32xbf16, #tpu.memory_space<vmem>>, %arg3: memref<1x2x8x8xbf16, #tpu.memory_space<vmem>>, %arg4: memref<1x2x8x8xbf16, #tpu.memory_space<vmem>>, %arg5: memref<1x8x1xi32, #tpu.memory_space<vmem>>, %arg6: memref<1x8xi32, #tpu.memory_space<vmem>>, %arg7: memref<1x32xf32, #tpu.memory_space<vmem>>, %arg8: memref<1x32xf32, #tpu.memory_space<vmem>>, %arg9: memref<32x16xbf16, #tpu.memory_space<vmem>>, %arg10: memref<16x32xbf16, #tpu.memory_space<vmem>>, %arg11: memref<1x8x32xf32, #tpu.memory_space<vmem>>, %arg12: memref<8x16xf32, #tpu.memory_space<vmem>>) attributes {dimension_semantics = [#tpu.dimension_semantics<parallel>, #tpu.dimension_semantics<parallel>], iteration_bounds = array<i64: 2, 1>, scalar_prefetch = 0 : i64, scratch_operands = 1 : i64, tpu.core_type = #tpu.core_type<tc>, window_params = [{transform_indices = @transform_0, window_bounds = array<i64: 1, 8, 32>}, {transform_indices = @transform_1, window_bounds = array<i64: 1, 2, 8, 8>}, {transform_indices = @transform_2, window_bounds = array<i64: 1, 2, 8, 8>}, {transform_indices = @transform_3, window_bounds = array<i64: 1, 8, 1>}, {pipeline_mode = #tpu.pipeline_mode<synchronous>, transform_indices = @transform_4, window_bounds = array<i64: 1, 8>}, {pipeline_mode = #tpu.pipeline_mode<synchronous>, transform_indices = @transform_5, window_bounds = array<i64: 1, 32>}, {pipeline_mode = #tpu.pipeline_mode<synchronous>, transform_indices = @transform_6, window_bounds = array<i64: 1, 32>}, {pipeline_mode = #tpu.pipeline_mode<synchronous>, transform_indices = @transform_7, window_bounds = array<i64: 32, 16>}, {pipeline_mode = #tpu.pipeline_mode<synchronous>, transform_indices = @transform_8, window_bounds = array<i64: 16, 32>}, {transform_indices = @transform_9, window_bounds = array<i64: 1, 8, 32>}]} {
    %c0 = arith.constant 0 : index
    %c0_0 = arith.constant 0 : index
    %c0_1 = arith.constant 0 : index
    %0 = vector.load %arg2[%c0, %c0_0, %c0_1] : memref<1x8x32xbf16, #tpu.memory_space<vmem>>, vector<1x8x32xbf16>
    %1 = vector.shape_cast %0 : vector<1x8x32xbf16> to vector<8x32xbf16>
    %2 = arith.extf %1 : vector<8x32xbf16> to vector<8x32xf32>
    %cst = arith.constant dense<0.000000e+00> : vector<8xf32>
    %3 = vector.multi_reduction <add>, %2, %cst [1] : vector<8x32xf32> to vector<8xf32>
    %4 = vector.shape_cast %3 : vector<8xf32> to vector<8x1xf32>
    %cst_2 = arith.constant 3.200000e+01 : f32
    %5 = vector.broadcast %cst_2 : f32 to vector<8x1xf32>
    %6 = arith.divf %4, %5 : vector<8x1xf32>
    %7 = vector.broadcast %6 : vector<8x1xf32> to vector<8x32xf32>
    %8 = arith.subf %2, %7 : vector<8x32xf32>
    %9 = arith.mulf %8, %8 : vector<8x32xf32>
    %cst_3 = arith.constant dense<0.000000e+00> : vector<8xf32>
    %10 = vector.multi_reduction <add>, %9, %cst_3 [1] : vector<8x32xf32> to vector<8xf32>
    %11 = vector.shape_cast %10 : vector<8xf32> to vector<8x1xf32>
    %cst_4 = arith.constant 3.200000e+01 : f32
    %12 = vector.broadcast %cst_4 : f32 to vector<8x1xf32>
    %13 = arith.divf %11, %12 : vector<8x1xf32>
    %14 = vector.broadcast %6 : vector<8x1xf32> to vector<8x32xf32>
    %15 = arith.subf %2, %14 : vector<8x32xf32>
    %cst_5 = arith.constant 9.99999974E-6 : f32
    %16 = vector.broadcast %cst_5 : f32 to vector<8x1xf32>
    %17 = arith.addf %13, %16 : vector<8x1xf32>
    %18 = math.rsqrt %17 : vector<8x1xf32>
    %19 = vector.broadcast %18 : vector<8x1xf32> to vector<8x32xf32>
    %20 = arith.mulf %15, %19 : vector<8x32xf32>
    %c0_6 = arith.constant 0 : index
    %c0_7 = arith.constant 0 : index
    %21 = vector.load %arg7[%c0_6, %c0_7] : memref<1x32xf32, #tpu.memory_space<vmem>>, vector<1x32xf32>
    %22 = vector.broadcast %21 : vector<1x32xf32> to vector<8x32xf32>
    %23 = arith.mulf %20, %22 : vector<8x32xf32>
    %c0_8 = arith.constant 0 : index
    %c0_9 = arith.constant 0 : index
    %24 = vector.load %arg8[%c0_8, %c0_9] : memref<1x32xf32, #tpu.memory_space<vmem>>, vector<1x32xf32>
    %25 = vector.broadcast %24 : vector<1x32xf32> to vector<8x32xf32>
    %26 = arith.addf %23, %25 : vector<8x32xf32>
    %27 = arith.truncf %26 : vector<8x32xf32> to vector<8x32xbf16>
    %c0_10 = arith.constant 0 : index
    %c0_11 = arith.constant 0 : index
    %28 = vector.load %arg9[%c0_10, %c0_11] : memref<32x16xbf16, #tpu.memory_space<vmem>>, vector<32x16xbf16>
    %cst_12 = arith.constant dense<0.000000e+00> : vector<8x16xf32>
    %29 = tpu.matmul %27, %28, %cst_12 {dimension_numbers = #tpu.dot_dimension_numbers<[1], [0], [0], [1], [0, 0, 1, 1], [], []>} : vector<8x32xbf16>, vector<32x16xbf16>, vector<8x16xf32> -> vector<8x16xf32>
    %c0_13 = arith.constant 0 : index
    %c0_14 = arith.constant 0 : index
    %c0_15 = arith.constant 0 : index
    %30 = vector.load %arg5[%c0_13, %c0_14, %c0_15] : memref<1x8x1xi32, #tpu.memory_space<vmem>>, vector<1x8x1xi32>
    %31 = vector.shape_cast %30 : vector<1x8x1xi32> to vector<8x1xi32>
    %c0_16 = arith.constant 0 : index
    %c0_17 = arith.constant 0 : index
    %32 = vector.load %arg6[%c0_16, %c0_17] : memref<1x8xi32, #tpu.memory_space<vmem>>, vector<1x8xi32>
    %33 = vector.broadcast %31 : vector<8x1xi32> to vector<8x8xi32>
    %34 = vector.broadcast %32 : vector<1x8xi32> to vector<8x8xi32>
    %35 = arith.cmpi eq, %33, %34 : vector<8x8xi32>
    %36 = vector.extract_strided_slice %29 {offsets = [0, 0], sizes = [8, 8], strides = [1, 1]} : vector<8x16xf32> to vector<8x8xf32>
    %37 = arith.truncf %36 : vector<8x8xf32> to vector<8x8xbf16>
    %c0_18 = arith.constant 0 : index
    %c0_19 = arith.constant 0 : index
    %c0_20 = arith.constant 0 : index
    %c0_21 = arith.constant 0 : index
    %38 = vector.load %arg3[%c0_18, %c0_19, %c0_20, %c0_21] : memref<1x2x8x8xbf16, #tpu.memory_space<vmem>>, vector<1x1x8x8xbf16>
    %39 = vector.shape_cast %38 : vector<1x1x8x8xbf16> to vector<8x8xbf16>
    %cst_22 = arith.constant dense<0.000000e+00> : vector<8x8xf32>
    %40 = tpu.matmul %37, %39, %cst_22 {dimension_numbers = #tpu.dot_dimension_numbers<[1], [0], [0], [1], [0, 0, 1, 1], [], []>} : vector<8x8xbf16>, vector<8x8xbf16>, vector<8x8xf32> -> vector<8x8xf32>
    %cst_23 = arith.constant -3.40282347E+38 : f32
    %41 = vector.broadcast %cst_23 : f32 to vector<8x8xf32>
    %42 = arith.select %35, %40, %41 : vector<8x8xi1>, vector<8x8xf32>
    %cst_24 = arith.constant dense<0xFF800000> : vector<8xf32>
    %43 = vector.multi_reduction <maximumf>, %42, %cst_24 [1] : vector<8x8xf32> to vector<8xf32>
    %44 = vector.shape_cast %43 : vector<8xf32> to vector<8x1xf32>
    %45 = vector.broadcast %44 : vector<8x1xf32> to vector<8x8xf32>
    %46 = arith.subf %42, %45 : vector<8x8xf32>
    %47 = math.exp %46 : vector<8x8xf32>
    %cst_25 = arith.constant dense<0.000000e+00> : vector<8xf32>
    %48 = vector.multi_reduction <add>, %47, %cst_25 [1] : vector<8x8xf32> to vector<8xf32>
    %49 = vector.shape_cast %48 : vector<8xf32> to vector<8x1xf32>
    %50 = tpu.reciprocal %49 {approx = true} : vector<8x1xf32> -> vector<8x1xf32>
    %51 = vector.broadcast %50 : vector<8x1xf32> to vector<8x8xf32>
    %52 = arith.mulf %47, %51 : vector<8x8xf32>
    %53 = arith.truncf %52 : vector<8x8xf32> to vector<8x8xbf16>
    %c0_26 = arith.constant 0 : index
    %c0_27 = arith.constant 0 : index
    %c0_28 = arith.constant 0 : index
    %c0_29 = arith.constant 0 : index
    %54 = vector.load %arg4[%c0_26, %c0_27, %c0_28, %c0_29] : memref<1x2x8x8xbf16, #tpu.memory_space<vmem>>, vector<1x1x8x8xbf16>
    %55 = vector.shape_cast %54 : vector<1x1x8x8xbf16> to vector<8x8xbf16>
    %cst_30 = arith.constant dense<0.000000e+00> : vector<8x8xf32>
    %56 = tpu.matmul %53, %55, %cst_30 {dimension_numbers = #tpu.dot_dimension_numbers<[1], [0], [0], [1], [0, 0, 1, 1], [], []>} : vector<8x8xbf16>, vector<8x8xbf16>, vector<8x8xf32> -> vector<8x8xf32>
    %c0_31 = arith.constant 0 : index
    %c0_32 = arith.constant 0 : index
    %57 = vector.load %arg12[%c0_31, %c0_32] : memref<8x16xf32, #tpu.memory_space<vmem>>, vector<8x8xf32>
    tpu.vector_store %arg12[%c0_31, %c0_32], %56 {strides = array<i32>} : memref<8x16xf32, #tpu.memory_space<vmem>>, vector<8x8xf32>,
    %58 = vector.extract_strided_slice %29 {offsets = [0, 8], sizes = [8, 8], strides = [1, 1]} : vector<8x16xf32> to vector<8x8xf32>
    %59 = arith.truncf %58 : vector<8x8xf32> to vector<8x8xbf16>
    %c0_33 = arith.constant 0 : index
    %c1 = arith.constant 1 : index
    %c0_34 = arith.constant 0 : index
    %c0_35 = arith.constant 0 : index
    %60 = vector.load %arg3[%c0_33, %c1, %c0_34, %c0_35] : memref<1x2x8x8xbf16, #tpu.memory_space<vmem>>, vector<1x1x8x8xbf16>
    %61 = vector.shape_cast %60 : vector<1x1x8x8xbf16> to vector<8x8xbf16>
    %cst_36 = arith.constant dense<0.000000e+00> : vector<8x8xf32>
    %62 = tpu.matmul %59, %61, %cst_36 {dimension_numbers = #tpu.dot_dimension_numbers<[1], [0], [0], [1], [0, 0, 1, 1], [], []>} : vector<8x8xbf16>, vector<8x8xbf16>, vector<8x8xf32> -> vector<8x8xf32>
    %cst_37 = arith.constant -3.40282347E+38 : f32
    %63 = vector.broadcast %cst_37 : f32 to vector<8x8xf32>
    %64 = arith.select %35, %62, %63 : vector<8x8xi1>, vector<8x8xf32>
    %cst_38 = arith.constant dense<0xFF800000> : vector<8xf32>
    %65 = vector.multi_reduction <maximumf>, %64, %cst_38 [1] : vector<8x8xf32> to vector<8xf32>
    %66 = vector.shape_cast %65 : vector<8xf32> to vector<8x1xf32>
    %67 = vector.broadcast %66 : vector<8x1xf32> to vector<8x8xf32>
    %68 = arith.subf %64, %67 : vector<8x8xf32>
    %69 = math.exp %68 : vector<8x8xf32>
    %cst_39 = arith.constant dense<0.000000e+00> : vector<8xf32>
    %70 = vector.multi_reduction <add>, %69, %cst_39 [1] : vector<8x8xf32> to vector<8xf32>
    %71 = vector.shape_cast %70 : vector<8xf32> to vector<8x1xf32>
    %72 = tpu.reciprocal %71 {approx = true} : vector<8x1xf32> -> vector<8x1xf32>
    %73 = vector.broadcast %72 : vector<8x1xf32> to vector<8x8xf32>
    %74 = arith.mulf %69, %73 : vector<8x8xf32>
    %75 = arith.truncf %74 : vector<8x8xf32> to vector<8x8xbf16>
    %c0_40 = arith.constant 0 : index
    %c1_41 = arith.constant 1 : index
    %c0_42 = arith.constant 0 : index
    %c0_43 = arith.constant 0 : index
    %76 = vector.load %arg4[%c0_40, %c1_41, %c0_42, %c0_43] : memref<1x2x8x8xbf16, #tpu.memory_space<vmem>>, vector<1x1x8x8xbf16>
    %77 = vector.shape_cast %76 : vector<1x1x8x8xbf16> to vector<8x8xbf16>
    %cst_44 = arith.constant dense<0.000000e+00> : vector<8x8xf32>
    %78 = tpu.matmul %75, %77, %cst_44 {dimension_numbers = #tpu.dot_dimension_numbers<[1], [0], [0], [1], [0, 0, 1, 1], [], []>} : vector<8x8xbf16>, vector<8x8xbf16>, vector<8x8xf32> -> vector<8x8xf32>
    %c0_45 = arith.constant 0 : index
    %c8 = arith.constant 8 : index
    %79 = vector.load %arg12[%c0_45, %c8] : memref<8x16xf32, #tpu.memory_space<vmem>>, vector<8x8xf32>
    tpu.vector_store %arg12[%c0_45, %c8], %78 {strides = array<i32>} : memref<8x16xf32, #tpu.memory_space<vmem>>, vector<8x8xf32>,
    %c0_46 = arith.constant 0 : index
    %c0_47 = arith.constant 0 : index
    %80 = vector.load %arg12[%c0_46, %c0_47] : memref<8x16xf32, #tpu.memory_space<vmem>>, vector<8x16xf32>
    %81 = arith.truncf %80 : vector<8x16xf32> to vector<8x16xbf16>
    %c0_48 = arith.constant 0 : index
    %c0_49 = arith.constant 0 : index
    %82 = vector.load %arg10[%c0_48, %c0_49] : memref<16x32xbf16, #tpu.memory_space<vmem>>, vector<16x32xbf16>
    %cst_50 = arith.constant dense<0.000000e+00> : vector<8x32xf32>
    %83 = tpu.matmul %81, %82, %cst_50 {dimension_numbers = #tpu.dot_dimension_numbers<[1], [0], [0], [1], [0, 0, 1, 1], [], []>} : vector<8x16xbf16>, vector<16x32xbf16>, vector<8x32xf32> -> vector<8x32xf32>
    %c0_51 = arith.constant 0 : index
    %c0_52 = arith.constant 0 : index
    %c0_53 = arith.constant 0 : index
    %84 = vector.load %arg11[%c0_51, %c0_52, %c0_53] : memref<1x8x32xf32, #tpu.memory_space<vmem>>, vector<1x8x32xf32>
    %85 = vector.shape_cast %84 : vector<1x8x32xf32> to vector<8x32xf32>
    %86 = vector.shape_cast %83 : vector<8x32xf32> to vector<1x8x32xf32>
    tpu.vector_store %arg11[%c0_51, %c0_52, %c0_53], %86 {strides = array<i32>} : memref<1x8x32xf32, #tpu.memory_space<vmem>>, vector<1x8x32xf32>,
    return
  }
  func.func @transform_0(%arg0: i32, %arg1: i32) -> (i32, i32, i32) {
    %c0_i32 = arith.constant 0 : i32
    %c0_i32_0 = arith.constant 0 : i32
    return %arg0, %arg1, %c0_i32 : i32, i32, i32
  }
  func.func @transform_1(%arg0: i32, %arg1: i32) -> (i32, i32, i32, i32) {
    %c0_i32 = arith.constant 0 : i32
    %c0_i32_0 = arith.constant 0 : i32
    %c0_i32_1 = arith.constant 0 : i32
    %c0_i32_2 = arith.constant 0 : i32
    return %arg0, %c0_i32, %c0_i32_0, %c0_i32_1 : i32, i32, i32, i32
  }
  func.func @transform_2(%arg0: i32, %arg1: i32) -> (i32, i32, i32, i32) {
    %c0_i32 = arith.constant 0 : i32
    %c0_i32_0 = arith.constant 0 : i32
    %c0_i32_1 = arith.constant 0 : i32
    %c0_i32_2 = arith.constant 0 : i32
    return %arg0, %c0_i32, %c0_i32_0, %c0_i32_1 : i32, i32, i32, i32
  }
  func.func @transform_3(%arg0: i32, %arg1: i32) -> (i32, i32, i32) {
    %c0_i32 = arith.constant 0 : i32
    %c0_i32_0 = arith.constant 0 : i32
    return %arg0, %arg1, %c0_i32 : i32, i32, i32
  }
  func.func @transform_4(%arg0: i32, %arg1: i32) -> (i32, i32) {
    %c0_i32 = arith.constant 0 : i32
    %c0_i32_0 = arith.constant 0 : i32
    %c0_i32_1 = arith.constant 0 : i32
    return %c0_i32, %c0_i32_0 : i32, i32
  }
  func.func @transform_5(%arg0: i32, %arg1: i32) -> (i32, i32) {
    %c0_i32 = arith.constant 0 : i32
    %c0_i32_0 = arith.constant 0 : i32
    %c0_i32_1 = arith.constant 0 : i32
    return %c0_i32, %c0_i32_0 : i32, i32
  }
  func.func @transform_6(%arg0: i32, %arg1: i32) -> (i32, i32) {
    %c0_i32 = arith.constant 0 : i32
    %c0_i32_0 = arith.constant 0 : i32
    %c0_i32_1 = arith.constant 0 : i32
    return %c0_i32, %c0_i32_0 : i32, i32
  }
  func.func @transform_7(%arg0: i32, %arg1: i32) -> (i32, i32) {
    %c0_i32 = arith.constant 0 : i32
    %c0_i32_0 = arith.constant 0 : i32
    %c0_i32_1 = arith.constant 0 : i32
    return %c0_i32, %c0_i32_0 : i32, i32
  }
  func.func @transform_8(%arg0: i32, %arg1: i32) -> (i32, i32) {
    %c0_i32 = arith.constant 0 : i32
    %c0_i32_0 = arith.constant 0 : i32
    %c0_i32_1 = arith.constant 0 : i32
    return %c0_i32, %c0_i32_0 : i32, i32
  }
  func.func @transform_9(%arg0: i32, %arg1: i32) -> (i32, i32, i32) {
    %c0_i32 = arith.constant 0 : i32
    %c0_i32_0 = arith.constant 0 : i32
    return %arg0, %arg1, %c0_i32 : i32, i32, i32
  }
}

</mosaic_0001>

<llo_original>
// kernel: tpu_custom_call.1
$region0: #{tpu_custom_call.1}
  #allocation0 [shape = 'u32[]', space=smem, size = 0x4, offset = 0x4, fixed_abs, tag = 'smem constant byte address 0x4 - core index']
  #allocation1 [shape = 'u32[72,128]{1,0:T(1,128)}', space=vmem, size = 0x9000, scoped, tag = 'internal scratch']
  #allocation2 [shape = 'f32[8,16]{1,0:T(8,128)}', space=vmem, size = 0x1000, scoped, tag = 'scratch operand']
  %s0 = inlined_call_operand.hbm [shape: bf16[2,8,32], index: 0, kind: input, shape index: {}]
  %s1 = inlined_call_operand.vmem [shape: bf16[2,2,8,8], index: 1, kind: input, shape index: {}]
  %s2 = inlined_call_operand.vmem [shape: bf16[2,2,8,8], index: 2, kind: input, shape index: {}]
  %s3 = inlined_call_operand.vmem [shape: s32[2,8,1], index: 3, kind: input, shape index: {}]
  %s4 = inlined_call_operand.vmem [shape: s32[1,8], index: 4, kind: input, shape index: {}]
  %s5 = inlined_call_operand.vmem [shape: f32[1,32], index: 5, kind: input, shape index: {}]
  %s6 = inlined_call_operand.vmem [shape: f32[1,32], index: 6, kind: input, shape index: {}]
  %s7 = inlined_call_operand.vmem [shape: bf16[32,16], index: 7, kind: input, shape index: {}]
  %s8 = inlined_call_operand.hbm [shape: bf16[16,32], index: 8, kind: input, shape index: {}]
  %s9 = inlined_call_operand.hbm [shape: f32[2,8,32], index: 9, kind: output, shape index: {}]
  %s10 = sld [smem:[#allocation0]]
  $region77: #{tpu_custom_call.1} parent=0
    _
  %s12 = ssub.s32 1, %s10
  %s13 = scalar_select 0, %s12, %s10
  $region1: #{tpu_custom_call.1} parent=0
    #allocation3 [shape = 'u8[4096]{0}', space=vmem, size = 0x1000, scoped, tag = 'input window, operand 0']
    #allocation4 [shape = 's32[2]{0}', space=sflag, size = 0x8, scoped, tag = 'scoped memory for tpu_custom_call.1']
    #allocation5 [shape = 's32[2]{0}', space=sflag, size = 0x8, scoped, tag = 'scoped memory for tpu_custom_call.1']
    #allocation6 [shape = 'u8[4096]{0}', space=vmem, size = 0x1000, scoped, tag = 'input window, operand 8, single buffered']
    #allocation7 [shape = 's32[1]{0}', space=sflag, size = 0x4, scoped, tag = 'scoped memory for tpu_custom_call.1']
    #allocation8 [shape = 'u8[8192]{0}', space=vmem, size = 0x2000, scoped, tag = 'output window, operand 0']
    %14 = vsyncpa [#allocation4], 0
    %s15 = scalar_lea.sflag [#allocation4], 1
    %16 = vsyncpa %s15, 0
    %17 = vsyncpa [#allocation7], 0
    %18 = vsyncpa [#allocation5], 0
    %s19 = scalar_lea.sflag [#allocation5], 1
    %20 = vsyncpa %s19, 0
    loop: start=0, step=1, limit=4
    $region2: #{tpu_custom_call.1} parent=1 // loop_pre_header
      _
    $region3: #{tpu_custom_call.1} parent=1 // loop_header
      %s22 = sphi 0, %s26
      %p23 = scmp.ge.s32.totalorder %s22, 4
      %s29 = sphi 0, %s41
      %s30 = sphi 0, %s37
      %s31 = sphi 0, %s29
      %s32 = sphi 0, %s30
      %s33 = sphi 0, %s31
      %s34 = sphi 0, %s32
      %s46 = sphi 0, %s48
      %s49 = sphi 0, %s46
      %s50 = sphi 0, %s49
      %s66 = sphi 0, %s50
      %s72 = sphi 0, %s74
      %s75 = sphi 0, %s72
      %s76 = sphi 0, %s75
      %s92 = sphi 0, %s76
      %s98 = sphi 0, %s100
      %s101 = sphi 0, %s98
      %s102 = sphi 0, %s101
      %s118 = sphi 0, %s102
      %s126 = sphi 0, %s128
      %s129 = sphi 0, %s126
      %s130 = sphi 0, %s129
      %s146 = sphi 0, %s130
      %s150 = sphi 0, %s150
      %s152 = sphi 0, %s150
      %s153 = sphi 0, %s152
      %s167 = sphi 0, %s153
      %s171 = sphi 0, %s171
      %s173 = sphi 0, %s171
      %s174 = sphi 0, %s173
      %s188 = sphi 0, %s174
      %s192 = sphi 0, %s192
      %s194 = sphi 0, %s192
      %s195 = sphi 0, %s194
      %s209 = sphi 0, %s195
      %s213 = sphi 0, %s213
      %s215 = sphi 0, %s213
      %s216 = sphi 0, %s215
      %s230 = sphi 0, %s216
      %s234 = sphi 0, %s234
      %s236 = sphi 0, %s234
      %s237 = sphi 0, %s236
      %s251 = sphi 0, %s237
      %s259 = sphi 0, %s261
      %s262 = sphi 0, %s259
      %s263 = sphi 0, %s262
      %s279 = sphi 0, %s263
    $region4: #{tpu_custom_call.1} parent=1 // loop_header_branch
      %25 = sbr.rel (%p23) target = $region8
    $region5: #{tpu_custom_call.1} parent=1 // loop_body
      %s27 = ssub.s32 %s22, 1
      %s28 = ssub.s32 %s22, 2
      %s35 = sadd.s32 1, %s30
      %p36 = scmp.ge.s32.totalorder %s35, 1
      %s37 = scalar_select %p36, 0, %s35
      %s38 = sadd.s32 1, %s29
      %s39 = scalar_select %p36, %s38, %s29
      %p40 = scmp.ge.s32.totalorder %s39, 2
      %s41 = scalar_select %p40, 0, %s39
      %s42 = ssub.s32 %s29, %s41
      %s43 = ssub.s32 %s30, %s37
      %s44 = sor.u32 %s42, %s43
      %p45 = scmp.eq.s32.totalorder %s44, 0
      %s47 = sadd.s32 %s46, 1
      %s48 = scalar_select %p45, %s46, %s47
      %p51 = pneg %p45
      %p52 = scmp.eq.s32.totalorder %s22, 1
      %p53 = por %p51, %p52
      %p54 = scmp.ne.s32.totalorder %s46, %s49
      %p55 = scmp.eq.s32.totalorder %s22, 0
      %p56 = por %p54, %p55
      %p57 = scmp.ne.s32.totalorder %s46, %s49
      %p58 = scmp.eq.s32.totalorder %s27, 1
      %p59 = por %p57, %p58
      %p60 = scmp.ne.s32.totalorder %s49, %s50
      %p61 = scmp.eq.s32.totalorder %s27, 0
      %p62 = por %p60, %p61
      %p63 = scmp.ne.s32.totalorder %s49, %s50
      %p64 = scmp.eq.s32.totalorder %s28, 1
      %p65 = por %p63, %p64
      %p67 = scmp.ne.s32.totalorder %s50, %s66
      %p68 = scmp.eq.s32.totalorder %s28, 0
      %p69 = por %p67, %p68
      %s70 = ssub.s32 %s29, %s41
      %p71 = scmp.eq.s32.totalorder %s70, 0
      %s73 = sadd.s32 %s72, 1
      %s74 = scalar_select %p71, %s72, %s73
      %p77 = pneg %p71
      %p78 = scmp.eq.s32.totalorder %s22, 1
      %p79 = por %p77, %p78
      %p80 = scmp.ne.s32.totalorder %s72, %s75
      %p81 = scmp.eq.s32.totalorder %s22, 0
      %p82 = por %p80, %p81
      %p83 = scmp.ne.s32.totalorder %s72, %s75
      %p84 = scmp.eq.s32.totalorder %s27, 1
      %p85 = por %p83, %p84
      %p86 = scmp.ne.s32.totalorder %s75, %s76
      %p87 = scmp.eq.s32.totalorder %s27, 0
      %p88 = por %p86, %p87
      %p89 = scmp.ne.s32.totalorder %s75, %s76
      %p90 = scmp.eq.s32.totalorder %s28, 1
      %p91 = por %p89, %p90
      %p93 = scmp.ne.s32.totalorder %s76, %s92
      %p94 = scmp.eq.s32.totalorder %s28, 0
      %p95 = por %p93, %p94
      %s96 = ssub.s32 %s29, %s41
      %p97 = scmp.eq.s32.totalorder %s96, 0
      %s99 = sadd.s32 %s98, 1
      %s100 = scalar_select %p97, %s98, %s99
      %p103 = pneg %p97
      %p104 = scmp.eq.s32.totalorder %s22, 1
      %p105 = por %p103, %p104
      %p106 = scmp.ne.s32.totalorder %s98, %s101
      %p107 = scmp.eq.s32.totalorder %s22, 0
      %p108 = por %p106, %p107
      %p109 = scmp.ne.s32.totalorder %s98, %s101
      %p110 = scmp.eq.s32.totalorder %s27, 1
      %p111 = por %p109, %p110
      %p112 = scmp.ne.s32.totalorder %s101, %s102
      %p113 = scmp.eq.s32.totalorder %s27, 0
      %p114 = por %p112, %p113
      %p115 = scmp.ne.s32.totalorder %s101, %s102
      %p116 = scmp.eq.s32.totalorder %s28, 1
      %p117 = por %p115, %p116
      %p119 = scmp.ne.s32.totalorder %s102, %s118
      %p120 = scmp.eq.s32.totalorder %s28, 0
      %p121 = por %p119, %p120
      %s122 = ssub.s32 %s29, %s41
      %s123 = ssub.s32 %s30, %s37
      %s124 = sor.u32 %s122, %s123
      %p125 = scmp.eq.s32.totalorder %s124, 0
      %s127 = sadd.s32 %s126, 1
      %s128 = scalar_select %p125, %s126, %s127
      %p131 = pneg %p125
      %p132 = scmp.eq.s32.totalorder %s22, 1
      %p133 = por %p131, %p132
      %p134 = scmp.ne.s32.totalorder %s126, %s129
      %p135 = scmp.eq.s32.totalorder %s22, 0
      %p136 = por %p134, %p135
      %p137 = scmp.ne.s32.totalorder %s126, %s129
      %p138 = scmp.eq.s32.totalorder %s27, 1
      %p139 = por %p137, %p138
      %p140 = scmp.ne.s32.totalorder %s129, %s130
      %p141 = scmp.eq.s32.totalorder %s27, 0
      %p142 = por %p140, %p141
      %p143 = scmp.ne.s32.totalorder %s129, %s130
      %p144 = scmp.eq.s32.totalorder %s28, 1
      %p145 = por %p143, %p144
      %p147 = scmp.ne.s32.totalorder %s130, %s146
      %p148 = scmp.eq.s32.totalorder %s28, 0
      %p149 = por %p147, %p148
      %s151 = sadd.s32 %s150, 1
      %p154 = scmp.eq.s32.totalorder %s22, 1
      %p155 = scmp.ne.s32.totalorder %s150, %s152
      %p156 = scmp.eq.s32.totalorder %s22, 0
      %p157 = por %p155, %p156
      %p158 = scmp.ne.s32.totalorder %s150, %s152
      %p159 = scmp.eq.s32.totalorder %s27, 1
      %p160 = por %p158, %p159
      %p161 = scmp.ne.s32.totalorder %s152, %s153
      %p162 = scmp.eq.s32.totalorder %s27, 0
      %p163 = por %p161, %p162
      %p164 = scmp.ne.s32.totalorder %s152, %s153
      %p165 = scmp.eq.s32.totalorder %s28, 1
      %p166 = por %p164, %p165
      %p168 = scmp.ne.s32.totalorder %s153, %s167
      %p169 = scmp.eq.s32.totalorder %s28, 0
      %p170 = por %p168, %p169
      %s172 = sadd.s32 %s171, 1
      %p175 = scmp.eq.s32.totalorder %s22, 1
      %p176 = scmp.ne.s32.totalorder %s171, %s173
      %p177 = scmp.eq.s32.totalorder %s22, 0
      %p178 = por %p176, %p177
      %p179 = scmp.ne.s32.totalorder %s171, %s173
      %p180 = scmp.eq.s32.totalorder %s27, 1
      %p181 = por %p179, %p180
      %p182 = scmp.ne.s32.totalorder %s173, %s174
      %p183 = scmp.eq.s32.totalorder %s27, 0
      %p184 = por %p182, %p183
      %p185 = scmp.ne.s32.totalorder %s173, %s174
      %p186 = scmp.eq.s32.totalorder %s28, 1
      %p187 = por %p185, %p186
      %p189 = scmp.ne.s32.totalorder %s174, %s188
      %p190 = scmp.eq.s32.totalorder %s28, 0
      %p191 = por %p189, %p190
      %s193 = sadd.s32 %s192, 1
      %p196 = scmp.eq.s32.totalorder %s22, 1
      %p197 = scmp.ne.s32.totalorder %s192, %s194
      %p198 = scmp.eq.s32.totalorder %s22, 0
      %p199 = por %p197, %p198
      %p200 = scmp.ne.s32.totalorder %s192, %s194
      %p201 = scmp.eq.s32.totalorder %s27, 1
      %p202 = por %p200, %p201
      %p203 = scmp.ne.s32.totalorder %s194, %s195
      %p204 = scmp.eq.s32.totalorder %s27, 0
      %p205 = por %p203, %p204
      %p206 = scmp.ne.s32.totalorder %s194, %s195
      %p207 = scmp.eq.s32.totalorder %s28, 1
      %p208 = por %p206, %p207
      %p210 = scmp.ne.s32.totalorder %s195, %s209
      %p211 = scmp.eq.s32.totalorder %s28, 0
      %p212 = por %p210, %p211
      %s214 = sadd.s32 %s213, 1
      %p217 = scmp.eq.s32.totalorder %s22, 1
      %p218 = scmp.ne.s32.totalorder %s213, %s215
      %p219 = scmp.eq.s32.totalorder %s22, 0
      %p220 = por %p218, %p219
      %p221 = scmp.ne.s32.totalorder %s213, %s215
      %p222 = scmp.eq.s32.totalorder %s27, 1
      %p223 = por %p221, %p222
      %p224 = scmp.ne.s32.totalorder %s215, %s216
      %p225 = scmp.eq.s32.totalorder %s27, 0
      %p226 = por %p224, %p225
      %p227 = scmp.ne.s32.totalorder %s215, %s216
      %p228 = scmp.eq.s32.totalorder %s28, 1
      %p229 = por %p227, %p228
      %p231 = scmp.ne.s32.totalorder %s216, %s230
      %p232 = scmp.eq.s32.totalorder %s28, 0
      %p233 = por %p231, %p232
      %s235 = sadd.s32 %s234, 1
      %p238 = scmp.eq.s32.totalorder %s22, 1
      %p239 = scmp.ne.s32.totalorder %s234, %s236
      %p240 = scmp.eq.s32.totalorder %s22, 0
      %p241 = por %p239, %p240
      %p242 = scmp.ne.s32.totalorder %s234, %s236
      %p243 = scmp.eq.s32.totalorder %s27, 1
      %p244 = por %p242, %p243
      %p245 = scmp.ne.s32.totalorder %s236, %s237
      %p246 = scmp.eq.s32.totalorder %s27, 0
      %p247 = por %p245, %p246
      %p248 = scmp.ne.s32.totalorder %s236, %s237
      %p249 = scmp.eq.s32.totalorder %s28, 1
      %p250 = por %p248, %p249
      %p252 = scmp.ne.s32.totalorder %s237, %s251
      %p253 = scmp.eq.s32.totalorder %s28, 0
      %p254 = por %p252, %p253
      %s255 = ssub.s32 %s29, %s41
      %s256 = ssub.s32 %s30, %s37
      %s257 = sor.u32 %s255, %s256
      %p258 = scmp.eq.s32.totalorder %s257, 0
      %s260 = sadd.s32 %s259, 1
      %s261 = scalar_select %p258, %s259, %s260
      %p264 = pneg %p258
      %p265 = scmp.eq.s32.totalorder %s22, 1
      %p266 = por %p264, %p265
      %p267 = scmp.ne.s32.totalorder %s259, %s262
      %p268 = scmp.eq.s32.totalorder %s22, 0
      %p269 = por %p267, %p268
      %p270 = scmp.ne.s32.totalorder %s259, %s262
      %p271 = scmp.eq.s32.totalorder %s27, 1
      %p272 = por %p270, %p271
      %p273 = scmp.ne.s32.totalorder %s262, %s263
      %p274 = scmp.eq.s32.totalorder %s27, 0
      %p275 = por %p273, %p274
      %p276 = scmp.ne.s32.totalorder %s262, %s263
      %p277 = scmp.eq.s32.totalorder %s28, 1
      %p278 = por %p276, %p277
      %p280 = scmp.ne.s32.totalorder %s263, %s279
      %p281 = scmp.eq.s32.totalorder %s28, 0
      %p282 = por %p280, %p281
      %p283 = scmp.le.s32.totalorder 1, %s22
      %p284 = scmp.lt.s32.totalorder %s22, 3
      %p285 = pnand %p283, %p284
      %p286 = pneg %p285
      // Predicated region
      $region9: #{tpu_custom_call.1} parent=5 // pred_check
        _
      $region10: #{tpu_custom_call.1} parent=5 // pred_check_branch
        %288 = sbr.rel (%p285) target = $region12
      $region11: #{tpu_custom_call.1} parent=5 // pred_region
        %s289 = ssub.s32 %s22, 1
        // Predicated region
        $region13: #{tpu_custom_call.1} parent=11 // pred_check
          %p290 = pneg %p163
        $region14: #{tpu_custom_call.1} parent=11 // pred_check_branch
          %292 = sbr.rel (%p290) target = $region16
        $region15: #{tpu_custom_call.1} parent=11 // pred_region
          _
        $region16: #{tpu_custom_call.1} parent=11 // pred_fallthru
          _
        // Predicated region
        $region17: #{tpu_custom_call.1} parent=11 // pred_check
          %p293 = pneg %p184
        $region18: #{tpu_custom_call.1} parent=11 // pred_check_branch
          %295 = sbr.rel (%p293) target = $region20
        $region19: #{tpu_custom_call.1} parent=11 // pred_region
          _
        $region20: #{tpu_custom_call.1} parent=11 // pred_fallthru
          _
        // Predicated region
        $region21: #{tpu_custom_call.1} parent=11 // pred_check
          %p296 = pneg %p205
        $region22: #{tpu_custom_call.1} parent=11 // pred_check_branch
          %298 = sbr.rel (%p296) target = $region24
        $region23: #{tpu_custom_call.1} parent=11 // pred_region
          _
        $region24: #{tpu_custom_call.1} parent=11 // pred_fallthru
          _
        // Predicated region
        $region25: #{tpu_custom_call.1} parent=11 // pred_check
          %p299 = pneg %p226
        $region26: #{tpu_custom_call.1} parent=11 // pred_check_branch
          %301 = sbr.rel (%p299) target = $region28
        $region27: #{tpu_custom_call.1} parent=11 // pred_region
          _
        $region28: #{tpu_custom_call.1} parent=11 // pred_fallthru
          _
        // Predicated region
        $region29: #{tpu_custom_call.1} parent=11 // pred_check
          %p302 = pneg %p247
        $region30: #{tpu_custom_call.1} parent=11 // pred_check_branch
          %304 = sbr.rel (%p302) target = $region32
        $region31: #{tpu_custom_call.1} parent=11 // pred_region
          %306 = vsyncadd [#allocation7], 0
          %s307 = sshll.u32 %s8, 4
          %s308 = int_to_ptr.hbm [resolvable:$true] %s307
          %s309 = sshll.u32 [#allocation6], 4
          %s310 = int_to_ptr.vmem [resolvable:$true] %s309
          %315 = dma.hbm_to_vmem [thread:$0]  %s308, 128, %s310, [#allocation7], 64, 64, 4
        $region32: #{tpu_custom_call.1} parent=11 // pred_fallthru
          _
      $region12: #{tpu_custom_call.1} parent=5 // pred_fallthru
        _
      %p316 = scmp.lt.s32.totalorder %s22, 2
      // Predicated region
      $region33: #{tpu_custom_call.1} parent=5 // pred_check
        %p317 = pneg %p316
      $region34: #{tpu_custom_call.1} parent=5 // pred_check_branch
        %319 = sbr.rel (%p317) target = $region36
      $region35: #{tpu_custom_call.1} parent=5 // pred_region
        // Predicated region
        $region37: #{tpu_custom_call.1} parent=35 // pred_check
          %p320 = pneg %p56
        $region38: #{tpu_custom_call.1} parent=35 // pred_check_branch
          %322 = sbr.rel (%p320) target = $region40
        $region39: #{tpu_custom_call.1} parent=35 // pred_region
          %s323 = sand.u32 %s46, 1
          %s324 = scalar_lea.sflag [#allocation4], %s323
          %s325 = sand.u32 %s46, 1
          %s326 = smul.addr %s325, 4
          %s327 = scalar_lea.vmem [#allocation3], %s326
          %329 = vsyncadd %s324, 0
          %s330 = sadd.s32 %s30, %s29
          %s331 = smul.addr %s330, 4
          %s332 = scalar_lea.hbm %s0, %s331
          %s334 = sshll.u32 %s332, 4
          %s335 = int_to_ptr.hbm [resolvable:$true] %s334
          %s336 = sshll.u32 %s327, 4
          %s337 = int_to_ptr.vmem [resolvable:$true] %s336
          %339 = dma.hbm_to_vmem [thread:$0]  %s335, 64, %s337, %s324
        $region40: #{tpu_custom_call.1} parent=35 // pred_fallthru
          _
        // Predicated region
        $region41: #{tpu_custom_call.1} parent=35 // pred_check
          %p340 = pneg %p82
        $region42: #{tpu_custom_call.1} parent=35 // pred_check_branch
          %342 = sbr.rel (%p340) target = $region44
        $region43: #{tpu_custom_call.1} parent=35 // pred_region
          %p343 = scmp.lt.s32.totalorder %s29, 1
          %s344 = scalar_select %p343, %s29, 1
          %s345 = smul.addr %s344, 2
          %s346 = smul.addr %s345, 4
          %s347 = scalar_lea.vmem %s1, %s346
        $region44: #{tpu_custom_call.1} parent=35 // pred_fallthru
          _
        // Predicated region
        $region45: #{tpu_custom_call.1} parent=35 // pred_check
          %p348 = pneg %p108
        $region46: #{tpu_custom_call.1} parent=35 // pred_check_branch
          %350 = sbr.rel (%p348) target = $region48
        $region47: #{tpu_custom_call.1} parent=35 // pred_region
          %p351 = scmp.lt.s32.totalorder %s29, 1
          %s352 = scalar_select %p351, %s29, 1
          %s353 = smul.addr %s352, 2
          %s354 = smul.addr %s353, 4
          %s355 = scalar_lea.vmem %s2, %s354
        $region48: #{tpu_custom_call.1} parent=35 // pred_fallthru
          _
        // Predicated region
        $region49: #{tpu_custom_call.1} parent=35 // pred_check
          %p356 = pneg %p136
        $region50: #{tpu_custom_call.1} parent=35 // pred_check_branch
          %358 = sbr.rel (%p356) target = $region52
        $region51: #{tpu_custom_call.1} parent=35 // pred_region
          %p359 = scmp.lt.s32.totalorder %s29, 1
          %s360 = scalar_select %p359, %s29, 1
          %p361 = scmp.lt.s32.totalorder %s30, 0
          %s362 = scalar_select %p361, %s30, 0
          %s363 = sadd.s32 %s362, %s360
          %s364 = smul.addr %s363, 8
          %s365 = scalar_lea.vmem %s3, %s364
        $region52: #{tpu_custom_call.1} parent=35 // pred_fallthru
          _
      $region36: #{tpu_custom_call.1} parent=5 // pred_fallthru
        _
      %p366 = scmp.le.s32.totalorder 1, %s22
      %p367 = scmp.lt.s32.totalorder %s22, 3
      %p368 = pnand %p366, %p367
      %p369 = pneg %p368
      // Predicated region
      $region53: #{tpu_custom_call.1} parent=5 // pred_check
        _
      $region54: #{tpu_custom_call.1} parent=5 // pred_check_branch
        %371 = sbr.rel (%p368) target = $region56
      $region55: #{tpu_custom_call.1} parent=5 // pred_region
        %s372 = ssub.s32 %s22, 1
        %s373 = sand.u32 %s49, 1
        %s374 = scalar_lea.sflag [#allocation4], %s373
        %s375 = sand.u32 %s49, 1
        %s376 = smul.addr %s375, 4
        %s377 = scalar_lea.vmem [#allocation3], %s376
        // Predicated region
        $region57: #{tpu_custom_call.1} parent=55 // pred_check
          %p378 = pneg %p62
        $region58: #{tpu_custom_call.1} parent=55 // pred_check_branch
          %380 = sbr.rel (%p378) target = $region60
        $region59: #{tpu_custom_call.1} parent=55 // pred_region
          %382 = dma.done %s374, 64
        $region60: #{tpu_custom_call.1} parent=55 // pred_fallthru
          _
        // Predicated region
        $region61: #{tpu_custom_call.1} parent=55 // pred_check
          %p383 = pneg %p247
        $region62: #{tpu_custom_call.1} parent=55 // pred_check_branch
          %385 = sbr.rel (%p383) target = $region64
        $region63: #{tpu_custom_call.1} parent=55 // pred_region
          %387 = dma.done [#allocation7], 128
        $region64: #{tpu_custom_call.1} parent=55 // pred_fallthru
          _
        %s388 = sand.u32 %s49, 1
        %s389 = scalar_lea.sflag [#allocation4], %s388
        %s390 = sand.u32 %s49, 1
        %s391 = smul.addr %s390, 4
        %s392 = scalar_lea.vmem [#allocation3], %s391
        %p393 = pneg %p62
        %p394 = pneg %p59
        %p395 = scmp.lt.s32.totalorder %s31, 1
        %s396 = scalar_select %p395, %s31, 1
        %s397 = smul.addr %s396, 2
        %s398 = smul.addr %s397, 4
        %s399 = scalar_lea.vmem %s1, %s398
        %p400 = pneg %p88
        %p401 = pneg %p85
        %p402 = scmp.lt.s32.totalorder %s31, 1
        %s403 = scalar_select %p402, %s31, 1
        %s404 = smul.addr %s403, 2
        %s405 = smul.addr %s404, 4
        %s406 = scalar_lea.vmem %s2, %s405
        %p407 = pneg %p114
        %p408 = pneg %p111
        %p409 = scmp.lt.s32.totalorder %s31, 1
        %s410 = scalar_select %p409, %s31, 1
        %p411 = scmp.lt.s32.totalorder %s32, 0
        %s412 = scalar_select %p411, %s32, 0
        %s413 = sadd.s32 %s412, %s410
        %s414 = smul.addr %s413, 8
        %s415 = scalar_lea.vmem %s3, %s414
        %p416 = pneg %p142
        %p417 = pneg %p139
        %p418 = pneg %p163
        %p419 = pneg %p160
        %p420 = pneg %p184
        %p421 = pneg %p181
        %p422 = pneg %p205
        %p423 = pneg %p202
        %p424 = pneg %p226
        %p425 = pneg %p223
        %p426 = pneg %p247
        %p427 = pneg %p244
        %p428 = pneg %p275
        %p429 = pneg %p272
        %s430 = sand.u32 %s262, 1
        %s431 = scalar_lea.sflag [#allocation5], %s430
        %s432 = sand.u32 %s262, 1
        %s433 = smul.addr %s432, 8
        %s434 = scalar_lea.vmem [#allocation8], %s433
        %p435 = scmp.lt.s32.totalorder %s31, 1
        %s436 = scalar_select %p435, %s31, 1
        %s437 = smul.addr %s436, 2
        %s438 = smul.addr %s437, 4
        %s439 = scalar_lea.vmem %s1, %s438
        %p440 = scmp.lt.s32.totalorder %s31, 1
        %s441 = scalar_select %p440, %s31, 1
        %s442 = smul.addr %s441, 2
        %s443 = smul.addr %s442, 4
        %s444 = scalar_lea.vmem %s2, %s443
        %p445 = scmp.lt.s32.totalorder %s31, 1
        %s446 = scalar_select %p445, %s31, 1
        %p447 = scmp.lt.s32.totalorder %s32, 0
        %s448 = scalar_select %p447, %s32, 0
        %s449 = sadd.s32 %s448, %s446
        %s450 = smul.addr %s449, 8
        %s451 = scalar_lea.vmem %s3, %s450
        %v453 = vld [vmem:[%s377] sm:$0xf]
        %v454 = vunpack.c.l.bf16 %v453
        %vm455 = vcmask 261120
        %v456 = vsel %vm455, %v454, 0.0
        %457 = vadd.xlane.f32.xlu0 %v456
        %v458 = vpop.xlane.xlu0 %457
        %v459 = vrcp.pop 32.0
        %v460 = vmul.f32 32.0, %v459
        %v461 = vsub.f32 1.0, %v460
        %v462 = vmul.f32 %v459, %v461
        %v463 = vadd.f32 %v459, %v462
        %vm464 = vweird.f32 %v459
        %v465 = vsel %vm464, %v459, %v463
        %v466 = vmul.f32 %v458, %v465
        %v467 = vsub.f32 %v454, %v466
        %v468 = vmul.f32 %v467, %v467
        %v469 = vsel %vm455, %v468, 0.0
        %470 = vadd.xlane.f32.xlu0 %v469
        %v471 = vpop.xlane.xlu0 %470
        %v472 = vmul.f32 %v471, %v465
        %v473 = vadd.f32 %v472, 1e-05
        %v474 = vrsqrt.pop %v473
        %v475 = vmul.f32 %v474, %v473
        %v476 = vmul.f32 %v475, %v474
        %v477 = vmul.f32 0.5, %v476
        %v478 = vsub.f32 1.5, %v477
        %v479 = vmul.f32 %v474, %v478
        %vm480 = vweird.f32 %v473
        %vm481 = vweird.f32 %v474
        %vm482 = vmor %vm480, %vm481
        %v483 = vsel %vm482, %v474, %v479
        %v484 = vmul.f32 %v467, %v483
        %v485 = vld [vmem:[%s5] sm:$0x1]
        %v487 = vperm.slane %v485, 0
        %v489 = vmul.f32 %v484, %v487
        %v490 = vld [vmem:[%s6] sm:$0x1]
        %v492 = vperm.slane %v490, 0
        %v494 = vadd.f32 %v489, %v492
        %v495 = vpack.c.bf16 %v494, %v494
        %v496 = vld [vmem:[%s7] sm:$0xf]
        %v497 = vld [vmem:[%s7 + $0x4] sm:$0xf]
        %v498 = vld [vmem:[%s7 + $0x8] sm:$0xf]
        %v499 = vld [vmem:[%s7 + $0xc] sm:$0xf]
        %v504 = vunpack.c.l.b16 %v496
        %v505 = vunpack.c.l.b16 %v497
        %v506 = vunpack.c.l.b16 %v498
        %v507 = vunpack.c.l.b16 %v499
        %v508 = vpack.c.b16 %v505, %v504
        %v509 = vpack.c.b16 %v507, %v506
        %v513 = vsel %vm455, %v495, 0
        %515 = vmatpush.bf16.msra.mxu0 0
        %516 = vmatpush.bf16.msra.mxu0 0
        %517 = vmatpush.bf16.msra.mxu0 0
        %518 = vmatpush.bf16.msra.mxu0 0
        %519 = vmatpush.bf16.msra.mxu0 0
        %520 = vmatpush.bf16.msra.mxu0 0
        %521 = vmatpush.bf16.msra.mxu0 %v509
        %522 = vmatpush.bf16.msra.mxu0 %v508
        %523 = vmatmul.bf16.gmra.mxu0 %v513
        %v524 = vpop.f32.mrf.mxu0
        %v525 = vadd.f32 0.0, %v524
        %v526 = vpop.f32.mrf.mxu0
        %527 = vdwg.mxu0
        %v528 = vld [vmem:[%s451] sm:$0xff]
        %v529 = vld [vmem:[%s4] sm:$0x1]
        %530 = vset.pattern.permute.xlu0 0
        %531 = vperm.xlu0 %530, %v528
        %v532 = vpop.permute.xlu0 %531
        %v533 = vperm.slane %v529, 0
        %vm534 = vcmp.eq.s32.totalorder %v532, %v533
        %v535 = vpack.c.bf16 %v525, %v525
        %v536 = vld [vmem:[%s439] sm:$0xf]
        %vm537 = vcmask 64512
        %v539 = vsel %vm537, %v535, 0
        %vm541 = vcmask 1043456
        %v543 = vsel %vm541, %v536, 0
        %545 = vmatpush.bf16.msra.mxu0 0
        %546 = vmatpush.bf16.msra.mxu0 0
        %547 = vmatpush.bf16.msra.mxu0 0
        %548 = vmatpush.bf16.msra.mxu0 0
        %549 = vmatpush.bf16.msra.mxu0 0
        %550 = vmatpush.bf16.msra.mxu0 0
        %551 = vmatpush.bf16.msra.mxu0 0
        %552 = vmatpush.bf16.msra.mxu0 %v543
        %553 = vmatmul.bf16.gmra.mxu0 %v539
        %v554 = vpop.f32.mrf.mxu0
        %v555 = vadd.f32 0.0, %v554
        %v556 = vpop.f32.mrf.mxu0
        %557 = vdwg.mxu0
        %v558 = vsel %vm534, %v555, -3.4028235e+38
        %v559 = vsel %vm537, %v558, -inf
        %560 = vmax.xlane.f32.xlu0 %v559
        %v561 = vpop.xlane.xlu0 %560
        %v562 = vsub.f32 %v558, %v561
        %v563 = vmul.f32 %v562, 1.442695
        %v564 = vpow.pop %v563
        %v565 = vsel %vm537, %v564, 0.0
        %566 = vadd.xlane.f32.xlu0 %v565
        %v567 = vpop.xlane.xlu0 %566
        %v568 = vrcp.pop %v567
        %v569 = vmul.f32 %v564, %v568
        %v570 = vpack.c.bf16 %v569, %v569
        %v571 = vld [vmem:[%s444] sm:$0xf]
        %v573 = vsel %vm537, %v570, 0
        %v576 = vsel %vm541, %v571, 0
        %578 = vmatpush.bf16.msra.mxu0 0
        %579 = vmatpush.bf16.msra.mxu0 0
        %580 = vmatpush.bf16.msra.mxu0 0
        %581 = vmatpush.bf16.msra.mxu0 0
        %582 = vmatpush.bf16.msra.mxu0 0
        %583 = vmatpush.bf16.msra.mxu0 0
        %584 = vmatpush.bf16.msra.mxu0 0
        %585 = vmatpush.bf16.msra.mxu0 %v576
        %586 = vmatmul.bf16.gmra.mxu0 %v573
        %v587 = vpop.f32.mrf.mxu0
        %v588 = vadd.f32 0.0, %v587
        %v589 = vpop.f32.mrf.mxu0
        %590 = vdwg.mxu0
        %591 = vst.msk [vmem:[#allocation2] sm:$0xff] %vm537, %v588
        %s592 = scalar_lea.vmem %s439, 4
        %v593 = vld [vmem:[%s592] sm:$0xf]
        %595 = vrot.lane.b32.xlu0 %v535, 120
        %v596 = vpop.permute.xlu0 %595
        %v598 = vsel %vm537, %v596, 0
        %v601 = vsel %vm541, %v593, 0
        %603 = vmatpush.bf16.msra.mxu0 0
        %604 = vmatpush.bf16.msra.mxu0 0
        %605 = vmatpush.bf16.msra.mxu0 0
        %606 = vmatpush.bf16.msra.mxu0 0
        %607 = vmatpush.bf16.msra.mxu0 0
        %608 = vmatpush.bf16.msra.mxu0 0
        %609 = vmatpush.bf16.msra.mxu0 0
        %610 = vmatpush.bf16.msra.mxu0 %v601
        %611 = vmatmul.bf16.gmra.mxu0 %v598
        %v612 = vpop.f32.mrf.mxu0
        %v613 = vadd.f32 0.0, %v612
        %v614 = vpop.f32.mrf.mxu0
        %615 = vdwg.mxu0
        %v616 = vsel %vm534, %v613, -3.4028235e+38
        %v617 = vsel %vm537, %v616, -inf
        %618 = vmax.xlane.f32.xlu0 %v617
        %v619 = vpop.xlane.xlu0 %618
        %v620 = vsub.f32 %v616, %v619
        %v621 = vmul.f32 %v620, 1.442695
        %v622 = vpow.pop %v621
        %v623 = vsel %vm537, %v622, 0.0
        %624 = vadd.xlane.f32.xlu0 %v623
        %v625 = vpop.xlane.xlu0 %624
        %v626 = vrcp.pop %v625
        %v627 = vmul.f32 %v622, %v626
        %v628 = vpack.c.bf16 %v627, %v627
        %s629 = scalar_lea.vmem %s444, 4
        %v630 = vld [vmem:[%s629] sm:$0xf]
        %v632 = vsel %vm537, %v628, 0
        %v635 = vsel %vm541, %v630, 0
        %637 = vmatpush.bf16.msra.mxu0 0
        %638 = vmatpush.bf16.msra.mxu0 0
        %639 = vmatpush.bf16.msra.mxu0 0
        %640 = vmatpush.bf16.msra.mxu0 0
        %641 = vmatpush.bf16.msra.mxu0 0
        %642 = vmatpush.bf16.msra.mxu0 0
        %643 = vmatpush.bf16.msra.mxu0 0
        %644 = vmatpush.bf16.msra.mxu0 %v635
        %645 = vmatmul.bf16.gmra.mxu0 %v632
        %v646 = vpop.f32.mrf.mxu0
        %v647 = vadd.f32 0.0, %v646
        %v648 = vpop.f32.mrf.mxu0
        %649 = vdwg.mxu0
        %651 = vrot.lane.b32.xlu0 %v647, 8
        %v652 = vpop.permute.xlu0 %651
        %vm654 = vcmask 130112
        %655 = vst.msk [vmem:[#allocation2] sm:$0xff] %vm654, %v652
        %v656 = vld [vmem:[#allocation2] sm:$0xff]
        %v657 = vpack.c.bf16 %v656, %v656
        %v658 = vld [vmem:[#allocation6] sm:$0xf]
        %v659 = vld [vmem:[#allocation6 + $0x4] sm:$0xf]
        %v662 = vunpack.c.l.b16 %v658
        %v663 = vunpack.c.l.b16 %v659
        %v664 = vpack.c.b16 %v663, %v662
        %vm666 = vcmask 130048
        %v668 = vsel %vm666, %v657, 0
        %670 = vmatpush.bf16.msra.mxu0 0
        %671 = vmatpush.bf16.msra.mxu0 0
        %672 = vmatpush.bf16.msra.mxu0 0
        %673 = vmatpush.bf16.msra.mxu0 0
        %674 = vmatpush.bf16.msra.mxu0 0
        %675 = vmatpush.bf16.msra.mxu0 0
        %676 = vmatpush.bf16.msra.mxu0 0
        %677 = vmatpush.bf16.msra.mxu0 %v664
        %678 = vmatmul.bf16.gmra.mxu0 %v668
        %v679 = vpop.f32.mrf.mxu0
        %v680 = vadd.f32 0.0, %v679
        %v681 = vpop.f32.mrf.mxu0
        %682 = vdwg.mxu0
        %683 = vst.msk [vmem:[%s434] sm:$0xff] %vm455, %v680
        %s684 = sand.u32 %s262, 1
        %s685 = scalar_lea.sflag [#allocation5], %s684
        %s686 = sand.u32 %s262, 1
        %s687 = smul.addr %s686, 8
        %s688 = scalar_lea.vmem [#allocation8], %s687
        // Predicated region
        $region65: #{tpu_custom_call.1} parent=55 // pred_check
          %p689 = pneg %p272
        $region66: #{tpu_custom_call.1} parent=55 // pred_check_branch
          %691 = sbr.rel (%p689) target = $region68
        $region67: #{tpu_custom_call.1} parent=55 // pred_region
          %693 = vsyncadd %s685, 0
          %s694 = sadd.s32 %s32, %s31
          %s695 = smul.addr %s694, 8
          %s696 = scalar_lea.hbm %s9, %s695
          %s698 = sshll.u32 %s688, 4
          %s699 = int_to_ptr.vmem [resolvable:$true] %s698
          %s700 = sshll.u32 %s696, 4
          %s701 = int_to_ptr.hbm [resolvable:$true] %s700
          %703 = dma.vmem_to_hbm [thread:$0]  %s699, 128, %s701, %s685
        $region68: #{tpu_custom_call.1} parent=55 // pred_fallthru
          _
      $region56: #{tpu_custom_call.1} parent=5 // pred_fallthru
        _
      %p704 = scmp.le.s32.totalorder 2, %s22
      // Predicated region
      $region69: #{tpu_custom_call.1} parent=5 // pred_check
        %p705 = pneg %p704
      $region70: #{tpu_custom_call.1} parent=5 // pred_check_branch
        %707 = sbr.rel (%p705) target = $region72
      $region71: #{tpu_custom_call.1} parent=5 // pred_region
        %s708 = ssub.s32 %s22, 2
        // Predicated region
        $region73: #{tpu_custom_call.1} parent=71 // pred_check
          %p709 = pneg %p278
        $region74: #{tpu_custom_call.1} parent=71 // pred_check_branch
          %711 = sbr.rel (%p709) target = $region76
        $region75: #{tpu_custom_call.1} parent=71 // pred_region
          %s712 = sand.u32 %s263, 1
          %s713 = scalar_lea.sflag [#allocation5], %s712
          %s714 = sand.u32 %s263, 1
          %s715 = smul.addr %s714, 8
          %s716 = scalar_lea.vmem [#allocation8], %s715
          %718 = dma.done %s713, 128
        $region76: #{tpu_custom_call.1} parent=71 // pred_fallthru
          _
      $region72: #{tpu_custom_call.1} parent=5 // pred_fallthru
        _
    $region6: #{tpu_custom_call.1} parent=1 // loop_footer
      %s26 = sadd.s32 1, %s22
    $region7: #{tpu_custom_call.1} parent=1 // loop_footer_branch
      %21 = sbr.rel target = $region3
    $region8: #{tpu_custom_call.1} parent=1 // loop_exit
      _
    %719 = vsyncpa [#allocation4], 1
    %s720 = scalar_lea.sflag [#allocation4], 1
    %721 = vsyncpa %s720, 1
    %722 = vsyncpa [#allocation7], 1
    %723 = vsyncpa [#allocation5], 1
    %s724 = scalar_lea.sflag [#allocation5], 1
    %725 = vsyncpa %s724, 1

</llo_original>
